<compile_context>
chip_gen: v6e
topology: v6e:2x2x1
jax: 0.10.0
libtpu: 0.0.40
codegen_flags: <defaults>
</compile_context>

<pallas_src>
import jax
import jax.numpy as jnp
from jax import lax
from jax.experimental import pallas as pl
from jax.experimental.pallas import tpu as pltpu


def _patch_embed_kernel(p_ref, w_ref, pos_ref, o_ref):
    # p_ref:   (Bt, T, K) bf16 patch rows (row 0 of each image is zeros = cls slot)
    # w_ref:   (K, E)  bf16 flattened conv weight       (grid-invariant, VMEM-resident)
    # pos_ref: (T, E)  f32  pos embedding (+bias, +cls) (grid-invariant, VMEM-resident)
    # o_ref:   (Bt, T, E)
    w = w_ref[...]
    pos = pos_ref[...]
    for i in range(p_ref.shape[0]):  # Bt is small & static -> unrolled 2-D MXU dots
        acc = jnp.dot(p_ref[i], w, preferred_element_type=jnp.float32)
        o_ref[i] = (acc + pos).astype(o_ref.dtype)


def prepare_patch_embed_params(conv_w, conv_b, cls_token, pos_embedding,
                               compute_dtype=jnp.bfloat16):
    """One-time parameter prep (hoisted out of the per-forward path)."""
    E, C, P, _ = conv_w.shape
    K = C * P * P
    # (E, C, P, P) -> (K, E); K order (c, p, q) matches the im2col flattening below.
    w_mat = conv_w.reshape(E, K).T.astype(compute_dtype)
    # Fold conv bias + cls token into the positional-embedding table:
    #   row 0     : pos[0] + cls_token      (cls slot; no conv bias)
    #   rows 1..N : pos[1:] + conv_b        (patch tokens)
    pos_plus = pos_embedding[0].astype(jnp.float32)
    pos_plus = pos_plus.at[1:, :].add(conv_b.astype(jnp.float32)[None, :])
    pos_plus = pos_plus.at[0, :].add(cls_token.reshape(E).astype(jnp.float32))
    return w_mat, pos_plus


def _pick_batch_block(B, per_image_bytes, vmem_cap):
    """Largest Bt dividing B that targets a few MB/step, fits VMEM (double-buffered)
    and keeps >= 2 grid blocks so both v7x TensorCores get work."""
    target = 4 << 20
    cap = max(1, min(target // max(per_image_bytes, 1),
                     (vmem_cap // 8) // max(2 * per_image_bytes, 1)))
    best = 1
    for bt in range(1, B + 1):
        if B % bt != 0 or bt > cap:
            continue
        if B // bt < 2 and B >= 2:
            continue  # keep >= 2 parallel blocks (v7x megacore)
        best = max(best, bt)
    return best


def patch_embedding_forward(x, w_mat, pos_plus, patch_size, out_dtype=None,
                            batch_block=None):
    """x: (B, C, H, W) float32. Returns (B, num_patches + 1, E)."""
    B, C, H, W = x.shape
    P = patch_size
    assert H % P == 0 and W % P == 0, "H, W must be divisible by patch_size"
    Hp, Wp = H // P, W // P
    N = Hp * Wp
    K, E = w_mat.shape
    assert K == C * P * P
    T = N + 1
    assert pos_plus.shape == (T, E)
    out_dtype = jnp.dtype(out_dtype if out_dtype is not None else x.dtype)
    compute_dtype = w_mat.dtype

    # Lane-dense output: pad embed dim up to a multiple of 128 (no-op for real ViT
    # configs; avoids masked vst.msk partial stores for toy dims like E=32).
    E_pad = -(-E // 128) * 128
    if E_pad != E:
        w_mat = jnp.pad(w_mat, ((0, 0), (0, E_pad - E)))
        pos_plus = jnp.pad(pos_plus, ((0, 0), (0, E_pad - E)))
    # TODO(synk): K (=C*P*P) below 128 lanes (demo K=64) still gives partially masked
    # loads on the patch stream; padding K would require padding the im2col producer
    # too (an extra HBM pass), so it is not done.

    # --- single fused producer: bf16 cast + im2col + zero row at the cls slot ---
    # TODO(synk): verify in HLO that cast + transpose + pad fuse into one producer;
    # if the pad materializes separately, drop it and fill out[:, 0, :] outside.
    xc = x.astype(compute_dtype)
    patches = xc.reshape(B, C, Hp, P, Wp, P).transpose(0, 2, 4, 1, 3, 5).reshape(B, N, K)
    patches = jnp.pad(patches, ((0, 0), (1, 0), (0, 0)))  # (B, T, K); row 0 = cls slot

    itm_c = jnp.dtype(compute_dtype).itemsize
    itm_o = out_dtype.itemsize

    try:  # generation-aware VMEM budget (64 MiB on v7x, 128 MiB on v5e/v6e)
        vmem_cap = int(pltpu.get_tpu_info().vmem_capacity_bytes)
    except Exception:
        vmem_cap = 64 << 20

    per_image_bytes = T * K * itm_c + T * E_pad * itm_o
    Bt = batch_block if batch_block is not None else _pick_batch_block(
        B, per_image_bytes, vmem_cap)
    assert B % Bt == 0, "batch_block must divide batch size"
    grid = (B // Bt,)
    # TODO(synk): for B == 1 on v7x a 1-point grid leaves one TensorCore idle;
    # split the token axis into >= 2 parallel blocks in that case.

    work_bytes = (2 * Bt * T * K * itm_c          # patches (double-buffered)
                  + 2 * K * E_pad * itm_c         # weight  (invariant; conservative 2x)
                  + 2 * T * E_pad * 4             # pos     (invariant; conservative 2x)
                  + 2 * Bt * T * E_pad * itm_o)   # output  (double-buffered)
    vmem_limit = int(min(work_bytes + (8 << 20), (vmem_cap * 9) // 10))

    cost = pl.CostEstimate(
        flops=2 * B * T * K * E_pad,
        transcendentals=0,
        bytes_accessed=(B * T * K * itm_c        # patches streamed once
                        + K * E_pad * itm_c      # weight fetched once (invariant)
                        + T * E_pad * 4          # pos table fetched once (invariant)
                        + B * T * E_pad * itm_o),
    )

    out = pl.pallas_call(
        _patch_embed_kernel,
        out_shape=jax.ShapeDtypeStruct((B, T, E_pad), out_dtype),
        grid_spec=pltpu.PrefetchScalarGridSpec(
            num_scalar_prefetch=0,
            grid=grid,
            in_specs=[
                pl.BlockSpec((Bt, T, K), lambda i: (i, 0, 0)),   # patches (streamed)
                pl.BlockSpec((K, E_pad), lambda i: (0, 0)),      # weight (invariant)
                pl.BlockSpec((T, E_pad), lambda i: (0, 0)),      # pos+bias+cls (invariant)
            ],
            out_specs=pl.BlockSpec((Bt, T, E_pad), lambda i: (i, 0, 0)),
        ),
        compiler_params=pltpu.CompilerParams(
            dimension_semantics=("parallel",),
            vmem_limit_bytes=vmem_limit),
        cost_estimate=cost,
    )(patches, w_mat, pos_plus)

    if E_pad != E:
        out = out[..., :E]
    # TODO(synk): nn.Dropout is identity in eval mode; train-mode RNG dropout not implemented.
    return out


def _reference_forward(x, conv_w, conv_b, cls_token, pos_embedding, patch_size):
    """Pure-JAX reference mirroring the PyTorch forward (eval mode), f32."""
    B = x.shape[0]
    E = conv_w.shape[0]
    y = lax.conv_general_dilated(
        x, conv_w, window_strides=(patch_size, patch_size), padding="VALID",
        dimension_numbers=("NCHW", "OIHW", "NCHW"))
    y = y + conv_b.reshape(1, E, 1, 1)
    y = y.reshape(B, E, -1).transpose(0, 2, 1)            # (B, N, E)
    cls = jnp.broadcast_to(cls_token, (B, 1, E))
    y = jnp.concatenate([cls, y], axis=1) + pos_embedding
    return y


if __name__ == "__main__":
    # in_channels=4, patch_size=4, image 16x16 -> num_patches=16, embed_dim=32
    B, C, Himg, Wimg = 2, 4, 16, 16
    P, E = 4, 32
    N = (Himg // P) * (Wimg // P)

    key = jax.random.PRNGKey(0)
    kx, kw, kb, kc, kp = jax.random.split(key, 5)
    x = jax.random.normal(kx, (B, C, Himg, Wimg), dtype=jnp.float32)
    conv_w = jax.random.normal(kw, (E, C, P, P), dtype=jnp.float32) * 0.02
    conv_b = jax.random.normal(kb, (E,), dtype=jnp.float32) * 0.02
    cls_token = jax.random.normal(kc, (1, 1, E), dtype=jnp.float32)
    pos_embedding = jax.random.normal(kp, (1, N + 1, E), dtype=jnp.float32)

    # One-time parameter prep (weight flatten/transpose + bias/cls/pos folding).
    w_mat, pos_plus = prepare_patch_embed_params(conv_w, conv_b, cls_token, pos_embedding)

    fwd = jax.jit(patch_embedding_forward,
                  static_argnames=("patch_size", "out_dtype", "batch_block"))
    out = fwd(x, w_mat, pos_plus, patch_size=P)
    out = jax.block_until_ready(out)

    ref = _reference_forward(x, conv_w, conv_b, cls_token, pos_embedding, P)
    assert out.shape == (B, N + 1, E), out.shape
    # bf16 MXU inputs with f32 accumulation -> loosened tolerance vs the f32 reference.
    assert jnp.allclose(out, ref, atol=2e-2, rtol=2e-2), "mismatch vs reference"
    print("KERNEL_OK")
</pallas_src>

<mosaic_0001>
module attributes {stable_mosaic.version = 11 : i64} {
  func.func @_patch_embed_kernel(%arg0: i32, %arg1: memref<1x17x64xbf16, #tpu.memory_space<vmem>>, %arg2: memref<64x128xbf16, #tpu.memory_space<vmem>>, %arg3: memref<17x128xf32, #tpu.memory_space<vmem>>, %arg4: memref<1x17x128xf32, #tpu.memory_space<vmem>>) attributes {dimension_semantics = [#tpu.dimension_semantics<parallel>], iteration_bounds = array<i64: 2>, scalar_prefetch = 0 : i64, scratch_operands = 0 : i64, tpu.core_type = #tpu.core_type<tc>, window_params = [{transform_indices = @transform_0, window_bounds = array<i64: 1, 17, 64>}, {pipeline_mode = #tpu.pipeline_mode<synchronous>, transform_indices = @transform_1, window_bounds = array<i64: 64, 128>}, {pipeline_mode = #tpu.pipeline_mode<synchronous>, transform_indices = @transform_2, window_bounds = array<i64: 17, 128>}, {transform_indices = @transform_3, window_bounds = array<i64: 1, 17, 128>}]} {
    %c0 = arith.constant 0 : index
    %c0_0 = arith.constant 0 : index
    %0 = vector.load %arg2[%c0, %c0_0] : memref<64x128xbf16, #tpu.memory_space<vmem>>, vector<64x128xbf16>
    %c0_1 = arith.constant 0 : index
    %c0_2 = arith.constant 0 : index
    %1 = vector.load %arg3[%c0_1, %c0_2] : memref<17x128xf32, #tpu.memory_space<vmem>>, vector<17x128xf32>
    %c0_3 = arith.constant 0 : index
    %c0_4 = arith.constant 0 : index
    %c0_5 = arith.constant 0 : index
    %2 = vector.load %arg1[%c0_3, %c0_4, %c0_5] : memref<1x17x64xbf16, #tpu.memory_space<vmem>>, vector<1x17x64xbf16>
    %3 = vector.shape_cast %2 : vector<1x17x64xbf16> to vector<17x64xbf16>
    %cst = arith.constant dense<0.000000e+00> : vector<17x128xf32>
    %4 = tpu.matmul %3, %0, %cst {dimension_numbers = #tpu.dot_dimension_numbers<[1], [0], [0], [1], [0, 0, 1, 1], [], []>} : vector<17x64xbf16>, vector<64x128xbf16>, vector<17x128xf32> -> vector<17x128xf32>
    %5 = arith.addf %4, %1 : vector<17x128xf32>
    %c0_6 = arith.constant 0 : index
    %c0_7 = arith.constant 0 : index
    %c0_8 = arith.constant 0 : index
    %6 = vector.load %arg4[%c0_6, %c0_7, %c0_8] : memref<1x17x128xf32, #tpu.memory_space<vmem>>, vector<1x17x128xf32>
    %7 = vector.shape_cast %6 : vector<1x17x128xf32> to vector<17x128xf32>
    %8 = vector.shape_cast %5 : vector<17x128xf32> to vector<1x17x128xf32>
    tpu.vector_store %arg4[%c0_6, %c0_7, %c0_8], %8 {strides = array<i32>} : memref<1x17x128xf32, #tpu.memory_space<vmem>>, vector<1x17x128xf32>,
    return
  }
  func.func @transform_0(%arg0: i32) -> (i32, i32, i32) {
    %c0_i32 = arith.constant 0 : i32
    %c0_i32_0 = arith.constant 0 : i32
    %c0_i32_1 = arith.constant 0 : i32
    return %arg0, %c0_i32, %c0_i32_0 : i32, i32, i32
  }
  func.func @transform_1(%arg0: i32) -> (i32, i32) {
    %c0_i32 = arith.constant 0 : i32
    %c0_i32_0 = arith.constant 0 : i32
    %c0_i32_1 = arith.constant 0 : i32
    return %c0_i32, %c0_i32_0 : i32, i32
  }
  func.func @transform_2(%arg0: i32) -> (i32, i32) {
    %c0_i32 = arith.constant 0 : i32
    %c0_i32_0 = arith.constant 0 : i32
    %c0_i32_1 = arith.constant 0 : i32
    return %c0_i32, %c0_i32_0 : i32, i32
  }
  func.func @transform_3(%arg0: i32) -> (i32, i32, i32) {
    %c0_i32 = arith.constant 0 : i32
    %c0_i32_0 = arith.constant 0 : i32
    %c0_i32_1 = arith.constant 0 : i32
    return %arg0, %c0_i32, %c0_i32_0 : i32, i32, i32
  }
}

</mosaic_0001>

<llo_original>
// kernel: patch_embedding_forward.1
$region0: #{patch_embedding_forward.1}
  #allocation0 [shape = 'u32[]', space=smem, size = 0x4, offset = 0x4, fixed_abs, tag = 'smem constant byte address 0x4 - core index']
  #allocation1 [shape = 'u32[144,128]{1,0:T(1,128)}', space=vmem, size = 0x12000, scoped, tag = 'internal scratch']
  %s0 = inlined_call_operand.vmem [shape: bf16[2,17,64], index: 0, kind: input, shape index: {}]
  %s1 = inlined_call_operand.vmem [shape: bf16[64,128], index: 1, kind: input, shape index: {}]
  %s2 = inlined_call_operand.vmem [shape: f32[17,128], index: 2, kind: input, shape index: {}]
  %s3 = inlined_call_operand.vmem [shape: f32[2,17,128], index: 3, kind: output, shape index: {}]
  %s4 = sld [smem:[#allocation0]]
  $region45: #{patch_embedding_forward.1} parent=0
    _
  %s6 = ssub.s32 1, %s4
  %s7 = scalar_select 0, %s6, %s4
  loop: start=0, step=1, limit=4
  $region2: #{patch_embedding_forward.1} parent=0 // loop_pre_header
    _
  $region3: #{patch_embedding_forward.1} parent=0 // loop_header
    %s9 = sphi 0, %s13
    %p10 = scmp.ge.s32.totalorder %s9, 4
    %s19 = sphi 0, %s21
    %s22 = sphi 0, %s19
    %s23 = sphi 0, %s22
    %s39 = sphi 0, %s23
    %s43 = sphi 0, %s43
    %s45 = sphi 0, %s43
    %s46 = sphi 0, %s45
    %s60 = sphi 0, %s46
    %s64 = sphi 0, %s64
    %s66 = sphi 0, %s64
    %s67 = sphi 0, %s66
    %s81 = sphi 0, %s67
    %s87 = sphi 0, %s89
    %s90 = sphi 0, %s87
    %s91 = sphi 0, %s90
    %s107 = sphi 0, %s91
  $region4: #{patch_embedding_forward.1} parent=0 // loop_header_branch
    %12 = sbr.rel (%p10) target = $region8
  $region5: #{patch_embedding_forward.1} parent=0 // loop_body
    %s14 = ssub.s32 %s9, 1
    %s15 = ssub.s32 %s9, 2
    %s16 = sadd.s32 %s9, 1
    %s17 = ssub.s32 %s9, %s16
    %p18 = scmp.eq.s32.totalorder %s17, 0
    %s20 = sadd.s32 %s19, 1
    %s21 = scalar_select %p18, %s19, %s20
    %p24 = pneg %p18
    %p25 = scmp.eq.s32.totalorder %s9, 1
    %p26 = por %p24, %p25
    %p27 = scmp.ne.s32.totalorder %s19, %s22
    %p28 = scmp.eq.s32.totalorder %s9, 0
    %p29 = por %p27, %p28
    %p30 = scmp.ne.s32.totalorder %s19, %s22
    %p31 = scmp.eq.s32.totalorder %s14, 1
    %p32 = por %p30, %p31
    %p33 = scmp.ne.s32.totalorder %s22, %s23
    %p34 = scmp.eq.s32.totalorder %s14, 0
    %p35 = por %p33, %p34
    %p36 = scmp.ne.s32.totalorder %s22, %s23
    %p37 = scmp.eq.s32.totalorder %s15, 1
    %p38 = por %p36, %p37
    %p40 = scmp.ne.s32.totalorder %s23, %s39
    %p41 = scmp.eq.s32.totalorder %s15, 0
    %p42 = por %p40, %p41
    %s44 = sadd.s32 %s43, 1
    %p47 = scmp.eq.s32.totalorder %s9, 1
    %p48 = scmp.ne.s32.totalorder %s43, %s45
    %p49 = scmp.eq.s32.totalorder %s9, 0
    %p50 = por %p48, %p49
    %p51 = scmp.ne.s32.totalorder %s43, %s45
    %p52 = scmp.eq.s32.totalorder %s14, 1
    %p53 = por %p51, %p52
    %p54 = scmp.ne.s32.totalorder %s45, %s46
    %p55 = scmp.eq.s32.totalorder %s14, 0
    %p56 = por %p54, %p55
    %p57 = scmp.ne.s32.totalorder %s45, %s46
    %p58 = scmp.eq.s32.totalorder %s15, 1
    %p59 = por %p57, %p58
    %p61 = scmp.ne.s32.totalorder %s46, %s60
    %p62 = scmp.eq.s32.totalorder %s15, 0
    %p63 = por %p61, %p62
    %s65 = sadd.s32 %s64, 1
    %p68 = scmp.eq.s32.totalorder %s9, 1
    %p69 = scmp.ne.s32.totalorder %s64, %s66
    %p70 = scmp.eq.s32.totalorder %s9, 0
    %p71 = por %p69, %p70
    %p72 = scmp.ne.s32.totalorder %s64, %s66
    %p73 = scmp.eq.s32.totalorder %s14, 1
    %p74 = por %p72, %p73
    %p75 = scmp.ne.s32.totalorder %s66, %s67
    %p76 = scmp.eq.s32.totalorder %s14, 0
    %p77 = por %p75, %p76
    %p78 = scmp.ne.s32.totalorder %s66, %s67
    %p79 = scmp.eq.s32.totalorder %s15, 1
    %p80 = por %p78, %p79
    %p82 = scmp.ne.s32.totalorder %s67, %s81
    %p83 = scmp.eq.s32.totalorder %s15, 0
    %p84 = por %p82, %p83
    %s85 = ssub.s32 %s9, %s16
    %p86 = scmp.eq.s32.totalorder %s85, 0
    %s88 = sadd.s32 %s87, 1
    %s89 = scalar_select %p86, %s87, %s88
    %p92 = pneg %p86
    %p93 = scmp.eq.s32.totalorder %s9, 1
    %p94 = por %p92, %p93
    %p95 = scmp.ne.s32.totalorder %s87, %s90
    %p96 = scmp.eq.s32.totalorder %s9, 0
    %p97 = por %p95, %p96
    %p98 = scmp.ne.s32.totalorder %s87, %s90
    %p99 = scmp.eq.s32.totalorder %s14, 1
    %p100 = por %p98, %p99
    %p101 = scmp.ne.s32.totalorder %s90, %s91
    %p102 = scmp.eq.s32.totalorder %s14, 0
    %p103 = por %p101, %p102
    %p104 = scmp.ne.s32.totalorder %s90, %s91
    %p105 = scmp.eq.s32.totalorder %s15, 1
    %p106 = por %p104, %p105
    %p108 = scmp.ne.s32.totalorder %s91, %s107
    %p109 = scmp.eq.s32.totalorder %s15, 0
    %p110 = por %p108, %p109
    %p111 = scmp.le.s32.totalorder 1, %s9
    %p112 = scmp.lt.s32.totalorder %s9, 3
    %p113 = pnand %p111, %p112
    %p114 = pneg %p113
    // Predicated region
    $region9: #{patch_embedding_forward.1} parent=5 // pred_check
      _
    $region10: #{patch_embedding_forward.1} parent=5 // pred_check_branch
      %116 = sbr.rel (%p113) target = $region12
    $region11: #{patch_embedding_forward.1} parent=5 // pred_region
      %s117 = ssub.s32 %s9, 1
      // Predicated region
      $region13: #{patch_embedding_forward.1} parent=11 // pred_check
        %p118 = pneg %p56
      $region14: #{patch_embedding_forward.1} parent=11 // pred_check_branch
        %120 = sbr.rel (%p118) target = $region16
      $region15: #{patch_embedding_forward.1} parent=11 // pred_region
        _
      $region16: #{patch_embedding_forward.1} parent=11 // pred_fallthru
        _
      // Predicated region
      $region17: #{patch_embedding_forward.1} parent=11 // pred_check
        %p121 = pneg %p77
      $region18: #{patch_embedding_forward.1} parent=11 // pred_check_branch
        %123 = sbr.rel (%p121) target = $region20
      $region19: #{patch_embedding_forward.1} parent=11 // pred_region
        _
      $region20: #{patch_embedding_forward.1} parent=11 // pred_fallthru
        _
    $region12: #{patch_embedding_forward.1} parent=5 // pred_fallthru
      _
    %p124 = scmp.lt.s32.totalorder %s9, 2
    // Predicated region
    $region21: #{patch_embedding_forward.1} parent=5 // pred_check
      %p125 = pneg %p124
    $region22: #{patch_embedding_forward.1} parent=5 // pred_check_branch
      %127 = sbr.rel (%p125) target = $region24
    $region23: #{patch_embedding_forward.1} parent=5 // pred_region
      // Predicated region
      $region25: #{patch_embedding_forward.1} parent=23 // pred_check
        %p128 = pneg %p29
      $region26: #{patch_embedding_forward.1} parent=23 // pred_check_branch
        %130 = sbr.rel (%p128) target = $region28
      $region27: #{patch_embedding_forward.1} parent=23 // pred_region
        %p131 = scmp.lt.s32.totalorder %s9, 1
        %s132 = scalar_select %p131, %s9, 1
        %s133 = smul.addr %s132, 3
        %s134 = smul.addr %s133, 4
        %s135 = scalar_lea.vmem %s0, %s134
      $region28: #{patch_embedding_forward.1} parent=23 // pred_fallthru
        _
    $region24: #{patch_embedding_forward.1} parent=5 // pred_fallthru
      _
    %p136 = scmp.le.s32.totalorder 1, %s9
    %p137 = scmp.lt.s32.totalorder %s9, 3
    %p138 = pnand %p136, %p137
    %p139 = pneg %p138
    // Predicated region
    $region29: #{patch_embedding_forward.1} parent=5 // pred_check
      _
    $region30: #{patch_embedding_forward.1} parent=5 // pred_check_branch
      %141 = sbr.rel (%p138) target = $region32
    $region31: #{patch_embedding_forward.1} parent=5 // pred_region
      %s142 = ssub.s32 %s9, 1
      %p143 = scmp.lt.s32.totalorder %s14, 1
      %s144 = scalar_select %p143, %s14, 1
      %s145 = smul.addr %s144, 3
      %s146 = smul.addr %s145, 4
      %s147 = scalar_lea.vmem %s0, %s146
      %p148 = pneg %p35
      %p149 = pneg %p32
      %p150 = pneg %p56
      %p151 = pneg %p53
      %p152 = pneg %p77
      %p153 = pneg %p74
      %p154 = pneg %p103
      %p155 = pneg %p100
      %p156 = scmp.lt.s32.totalorder %s14, 1
      %s157 = scalar_select %p156, %s14, 1
      %s158 = smul.addr %s157, 3
      %s159 = smul.addr %s158, 8
      %s160 = scalar_lea.vmem %s3, %s159
      %p161 = scmp.lt.s32.totalorder %s14, 1
      %s162 = scalar_select %p161, %s14, 1
      %s163 = smul.addr %s162, 3
      %s164 = smul.addr %s163, 4
      %s165 = scalar_lea.vmem %s0, %s164
      %p166 = scmp.lt.s32.totalorder %s14, 1
      %s167 = scalar_select %p166, %s14, 1
      %s168 = smul.addr %s167, 3
      %s169 = smul.addr %s168, 8
      %s170 = scalar_lea.vmem %s3, %s169
      %v172 = vld [vmem:[%s1] sm:$0xf]
      %v173 = vld [vmem:[%s1 + $0x4] sm:$0xf]
      %v174 = vld [vmem:[%s1 + $0x8] sm:$0xf]
      %v175 = vld [vmem:[%s1 + $0xc] sm:$0xf]
      %v176 = vld [vmem:[%s1 + $0x10] sm:$0xf]
      %v177 = vld [vmem:[%s1 + $0x14] sm:$0xf]
      %v178 = vld [vmem:[%s1 + $0x18] sm:$0xf]
      %v179 = vld [vmem:[%s1 + $0x1c] sm:$0xf]
      %v180 = vld [vmem:[%s2] sm:$0xff]
      %v181 = vld [vmem:[%s2 + $0x8] sm:$0xff]
      %v182 = vld [vmem:[%s2 + $0x10] sm:$0x1]
      %v183 = vld [vmem:[%s165] sm:$0xf]
      %v184 = vld [vmem:[%s165 + $0x4] sm:$0xf]
      %v185 = vld [vmem:[%s165 + $0x8] sm:$0x1]
      %v189 = vunpack.c.l.b16 %v183
      %v190 = vunpack.c.l.b16 %v184
      %v191 = vunpack.c.l.b16 %v185
      %v192 = vpack.c.b16 %v190, %v189
      %v193 = vpack.c.b16 %v191, %v191
      %v202 = vunpack.c.l.b16 %v172
      %v203 = vunpack.c.l.b16 %v173
      %v204 = vunpack.c.l.b16 %v174
      %v205 = vunpack.c.l.b16 %v175
      %v206 = vunpack.c.l.b16 %v176
      %v207 = vunpack.c.l.b16 %v177
      %v208 = vunpack.c.l.b16 %v178
      %v209 = vunpack.c.l.b16 %v179
      %v210 = vpack.c.b16 %v203, %v202
      %v211 = vpack.c.b16 %v205, %v204
      %v212 = vpack.c.b16 %v207, %v206
      %v213 = vpack.c.b16 %v209, %v208
      %vm218 = vcmask 523264
      %v220 = vsel %vm218, %v192, 0
      %v223 = vsel %vm218, %v193, 0
      %225 = vmatprep.subr.bf16.mxu0 0
      %226 = vmatpush1.bf16.msra.mxu0 0
      %227 = vmatprep.subr.bf16.mxu0 0
      %228 = vmatpush1.bf16.msra.mxu0 0
      %229 = vmatprep.subr.bf16.mxu0 0
      %230 = vmatpush1.bf16.msra.mxu0 0
      %231 = vmatprep.subr.bf16.mxu0 0
      %232 = vmatpush1.bf16.msra.mxu0 0
      %233 = vmatprep.subr.bf16.mxu0 0
      %234 = vmatpush1.bf16.msra.mxu0 %v213
      %235 = vmatprep.subr.bf16.mxu0 0
      %236 = vmatpush1.bf16.msra.mxu0 %v212
      %237 = vmatprep.subr.bf16.mxu0 0
      %238 = vmatpush1.bf16.msra.mxu0 %v211
      %239 = vmatprep.subr.bf16.mxu0 0
      %240 = vmatpush1.bf16.msra.mxu0 %v210
      %241 = vmatprep.subr.bf16.mxu0 0
      %242 = vmatpush2.bf16.msra.mxu0 0
      %243 = vmatprep.subr.bf16.mxu0 0
      %244 = vmatpush2.bf16.msra.mxu0 0
      %245 = vmatprep.subr.bf16.mxu0 0
      %246 = vmatpush2.bf16.msra.mxu0 0
      %247 = vmatprep.subr.bf16.mxu0 0
      %248 = vmatpush2.bf16.msra.mxu0 0
      %249 = vmatprep.subr.bf16.mxu0 0
      %250 = vmatpush2.bf16.msra.mxu0 0
      %251 = vmatprep.subr.bf16.mxu0 0
      %252 = vmatpush2.bf16.msra.mxu0 0
      %253 = vmatprep.subr.bf16.mxu0 0
      %254 = vmatpush2.bf16.msra.mxu0 0
      %255 = vmatprep.subr.bf16.mxu0 0
      %256 = vmatpush2.bf16.msra.mxu0 0
      %257 = vmatprep.mubr.bf16.mxu0 0
      %258 = vmatmul.mubr.bf16.gmra.mxu0 %v220
      %v259 = vpop.f32.mrf.mxu0
      %v260 = vadd.f32 %v180, %v259
      %v261 = vpop.f32.mrf.mxu0
      %v262 = vpop.f32.mrf.mxu0
      %v263 = vadd.f32 %v181, %v262
      %v264 = vpop.f32.mrf.mxu0
      %265 = vmatprep.mubr.bf16.mxu0 0
      %266 = vmatmul.mubr.bf16.gmra.mxu0 %v223
      %v267 = vpop.f32.mrf.mxu0
      %v268 = vadd.f32 %v182, %v267
      %v269 = vpop.f32.mrf.mxu0
      %v270 = vpop.f32.mrf.mxu0
      %v271 = vpop.f32.mrf.mxu0
      %272 = vdwg.mxu0
      %273 = vst [vmem:[%s170] sm:$0xff] %v260
      %274 = vst [vmem:[%s170 + $0x8] sm:$0xff] %v263
      %275 = vst [vmem:[%s170 + $0x10] sm:$0x1] %v268
      %p276 = scmp.lt.s32.totalorder %s14, 1
      %s277 = scalar_select %p276, %s14, 1
      %s278 = smul.addr %s277, 3
      %s279 = smul.addr %s278, 8
      %s280 = scalar_lea.vmem %s3, %s279
      // Predicated region
      $region33: #{patch_embedding_forward.1} parent=31 // pred_check
        %p281 = pneg %p100
      $region34: #{patch_embedding_forward.1} parent=31 // pred_check_branch
        %283 = sbr.rel (%p281) target = $region36
      $region35: #{patch_embedding_forward.1} parent=31 // pred_region
        _
      $region36: #{patch_embedding_forward.1} parent=31 // pred_fallthru
        _
    $region32: #{patch_embedding_forward.1} parent=5 // pred_fallthru
      _
    %p284 = scmp.le.s32.totalorder 2, %s9
    // Predicated region
    $region37: #{patch_embedding_forward.1} parent=5 // pred_check
      %p285 = pneg %p284
    $region38: #{patch_embedding_forward.1} parent=5 // pred_check_branch
      %287 = sbr.rel (%p285) target = $region40
    $region39: #{patch_embedding_forward.1} parent=5 // pred_region
      %s288 = ssub.s32 %s9, 2
      // Predicated region
      $region41: #{patch_embedding_forward.1} parent=39 // pred_check
        %p289 = pneg %p106
      $region42: #{patch_embedding_forward.1} parent=39 // pred_check_branch
        %291 = sbr.rel (%p289) target = $region44
      $region43: #{patch_embedding_forward.1} parent=39 // pred_region
        %p292 = scmp.lt.s32.totalorder %s15, 1
        %s293 = scalar_select %p292, %s15, 1
        %s294 = smul.addr %s293, 3
        %s295 = smul.addr %s294, 8
        %s296 = scalar_lea.vmem %s3, %s295
      $region44: #{patch_embedding_forward.1} parent=39 // pred_fallthru
        _
    $region40: #{patch_embedding_forward.1} parent=5 // pred_fallthru
      _
  $region6: #{patch_embedding_forward.1} parent=0 // loop_footer
    %s13 = sadd.s32 1, %s9
  $region7: #{patch_embedding_forward.1} parent=0 // loop_footer_branch
    %8 = sbr.rel target = $region3
  $region8: #{patch_embedding_forward.1} parent=0 // loop_exit
    _

</llo_original>
